<compile_context>
chip_gen: v6e
topology: v6e:2x2x1
jax: 0.10.0
libtpu: 0.0.40
codegen_flags: <defaults>
</compile_context>

<pallas_src>
import jax
import jax.numpy as jnp
from jax.experimental import pallas as pl
from jax.experimental.pallas import tpu as pltpu


def _round_up(x, m):
    return ((x + m - 1) // m) * m


def _vmem_capacity_bytes():
    """Physical VMEM per TensorCore; conservative v7x value if the query fails."""
    try:
        cap = getattr(pltpu.get_tpu_info(), "vmem_capacity_bytes", None)
        if cap:
            return int(cap)
    except Exception:
        pass
    return 64 * 1024 * 1024


# ---------------------------------------------------------------------------
# Fast path: the whole (D, C_pad) weight stays resident in VMEM (constant
# index_map); the grid tiles only the batch axis so x / out DMAs pipeline
# behind the MXU + EUP work.
# ---------------------------------------------------------------------------
def _resident_kernel(x_ref, w_ref, b_ref, o_ref):
    logits = jnp.dot(x_ref[...], w_ref[...],
                     preferred_element_type=jnp.float32) + b_ref[...]
    m = jnp.max(logits, axis=-1, keepdims=True)
    shifted = logits - m
    lse = jnp.log(jnp.sum(jnp.exp(shifted), axis=-1, keepdims=True))
    o_ref[...] = (shifted - lse).astype(o_ref.dtype)


# ---------------------------------------------------------------------------
# Large-vocabulary fallback: class axis streamed through VMEM in (D, tc)
# weight tiles; raw logit tiles are emitted directly while an online
# (running max, running sum-exp) is carried in VMEM scratch, and the final
# per-row log-sum-exp is written once at the last class tile.  The wrapper
# then does a single fused `logits - lse` (+ class slice) pass in XLA.
# ---------------------------------------------------------------------------
def _streamed_kernel(x_ref, w_ref, b_ref, logits_ref, lse_ref, m_ref, l_ref):
    j = pl.program_id(1)

    @pl.when(j == 0)
    def _():
        m_ref[...] = jnp.full_like(m_ref, -jnp.inf)
        l_ref[...] = jnp.zeros_like(l_ref)

    logits = jnp.dot(x_ref[...], w_ref[...],
                     preferred_element_type=jnp.float32) + b_ref[...]
    logits_ref[...] = logits

    m_prev = m_ref[...]
    m_new = jnp.maximum(m_prev, jnp.max(logits, axis=-1, keepdims=True))
    l_ref[...] = (l_ref[...] * jnp.exp(m_prev - m_new)
                  + jnp.sum(jnp.exp(logits - m_new), axis=-1, keepdims=True))
    m_ref[...] = m_new

    @pl.when(j == pl.num_programs(1) - 1)
    def _():
        lse_ref[...] = m_ref[...] + jnp.log(l_ref[...])
    # TODO(synk): fold the final `logits - lse` into this kernel by parking the
    # raw logits in a revisited (tb, C_pad) output block and normalizing
    # in-place at the last class step (saves one XLA pass over the output).


def linear_logsoftmax(x, w_t, b, *, use_bf16=False, force_stream=False):
    """log_softmax(x @ w_t + b, axis=1) -> f32 (B, C).

    x: (B, D); w_t: (D, C) = transposed nn.Linear weight; b: (C,).
    use_bf16 feeds the MXU bf16 operands with f32 accumulation (valid on
    v5e/v6e/v7x alike; expect ~1e-2 abs error vs. an f32 reference).
    """
    B, D = x.shape
    C = w_t.shape[1]
    assert w_t.shape == (D, C) and b.shape == (C,)

    in_dtype = jnp.bfloat16 if use_bf16 else jnp.float32
    in_bytes = 2 if use_bf16 else 4
    NEG = jnp.float32(-1e30)

    # --- Generation-aware VMEM budget --------------------------------------
    cap = _vmem_capacity_bytes()
    big_vmem = cap >= 96 * 1024 * 1024                 # v5e / v6e (128 MiB)
    vmem_limit = (64 if big_vmem else 32) * 1024 * 1024
    budget = vmem_limit - 8 * 1024 * 1024              # headroom vs. the limit
    tb_cap = 1024 if big_vmem else 512

    # --- Lane-dense class padding (256-aligned for v6e/v7x 256x256 MXU). ----
    # Padded class columns get a -1e30 bias so they never win the row max and
    # exp() underflows to 0; they are sliced off after the call.
    c_align = 256 if C >= 256 else 128
    C_pad = _round_up(C, c_align)

    # Resident-path working set.  2x = pipeline double-buffering (constant
    # index_map blocks may already be single-buffered by Mosaic, but count 2x
    # conservatively); per-row includes the in-kernel f32 logits/exp temps.
    fixed = 2 * (D * C_pad * in_bytes + C_pad * 4)
    per_row = 2 * D * in_bytes + 2 * C_pad * 4 + 2 * C_pad * 4
    use_stream = force_stream or (fixed + 8 * per_row > budget)

    tc = 0
    if use_stream:
        tc = 256 if C >= 256 else 128
        C_pad = _round_up(C, tc)
        fixed = 2 * (D * tc * in_bytes + tc * 4)
        per_row = 2 * D * in_bytes + 4 * tc * 4 + 2 * 128 * 4
        # TODO(synk): if even a single (D, tc) weight tile does not fit (huge
        # D), add a K-tile grid axis with an f32 accumulator.

    # --- Batch tile ---------------------------------------------------------
    tb = (budget - fixed) // per_row if budget > fixed else 8
    tb = max(8, min(int(tb), tb_cap))
    tb = min(tb, _round_up(B, 8))                      # don't over-tile tiny B
    if B >= 16:
        # keep >= 2 grid steps so both of v7x's TensorCores get work
        tb = min(tb, _round_up(-(-B // 2), 8))
    tb = (tb // 256) * 256 if tb >= 512 else (tb // 8) * 8
    tb = max(tb, 8)
    nb = pl.cdiv(B, tb)

    # --- Operands (no batch padding: Pallas masks the ragged last block) ----
    x_in = x.astype(in_dtype)
    if C_pad != C:
        w_in = jnp.zeros((D, C_pad), in_dtype).at[:, :C].set(w_t.astype(in_dtype))
        b_in = jnp.full((1, C_pad), NEG, jnp.float32).at[0, :C].set(
            b.astype(jnp.float32))
    else:
        w_in = w_t.astype(in_dtype)
        b_in = b.astype(jnp.float32).reshape(1, C_pad)

    # TODO(synk): for tiny problems (B*D*C below ~1 MFLOP) a fused XLA
    # log_softmax(x @ w_t + b) beats the pallas_call fixed cost; dispatch is
    # left to the caller so this script always exercises the kernel.

    if not use_stream:
        cost = pl.CostEstimate(
            flops=2 * B * D * C_pad,
            transcendentals=B * C_pad,
            bytes_accessed=int(in_bytes * (B * D + D * C_pad)
                               + 4 * (B * C_pad + C_pad)),
        )
        out = pl.pallas_call(
            _resident_kernel,
            out_shape=jax.ShapeDtypeStruct((B, C_pad), jnp.float32),
            grid=(nb,),
            in_specs=[
                pl.BlockSpec((tb, D), lambda i: (i, 0)),       # batch-tiled x
                pl.BlockSpec((D, C_pad), lambda i: (0, 0)),    # resident weight
                pl.BlockSpec((1, C_pad), lambda i: (0, 0)),    # resident bias
            ],
            out_specs=pl.BlockSpec((tb, C_pad), lambda i: (i, 0)),
            compiler_params=pltpu.CompilerParams(
                dimension_semantics=("parallel",),             # megacore split
                vmem_limit_bytes=vmem_limit,
            ),
            cost_estimate=cost,
        )(x_in, w_in, b_in)
        return out if C_pad == C else out[:, :C]

    # ---- class-streamed fallback path --------------------------------------
    nc = C_pad // tc
    cost = pl.CostEstimate(
        flops=2 * B * D * C_pad,
        transcendentals=B * C_pad,
        bytes_accessed=int(in_bytes * (B * D + nb * D * C_pad)
                           + 4 * (B * C_pad + B + nb * C_pad)),
    )
    logits_hbm, lse_hbm = pl.pallas_call(
        _streamed_kernel,
        out_shape=(jax.ShapeDtypeStruct((B, C_pad), jnp.float32),
                   jax.ShapeDtypeStruct((B, 1), jnp.float32)),
        grid=(nb, nc),
        in_specs=[
            pl.BlockSpec((tb, D), lambda i, j: (i, 0)),    # x fetched once per i
            pl.BlockSpec((D, tc), lambda i, j: (0, j)),    # streamed weight tile
            pl.BlockSpec((1, tc), lambda i, j: (0, j)),    # streamed bias tile
        ],
        out_specs=(pl.BlockSpec((tb, tc), lambda i, j: (i, j)),
                   pl.BlockSpec((tb, 1), lambda i, j: (i, 0))),
        scratch_shapes=[pltpu.VMEM((tb, 1), jnp.float32),   # running max
                        pltpu.VMEM((tb, 1), jnp.float32)],  # running sum-exp
        compiler_params=pltpu.CompilerParams(
            dimension_semantics=("parallel", "arbitrary"),
            vmem_limit_bytes=vmem_limit,
        ),
        cost_estimate=cost,
    )(x_in, w_in, b_in)

    # Single fused normalize + class-slice pass in XLA.
    return logits_hbm[:, :C] - lse_hbm


if __name__ == "__main__":
    key = jax.random.PRNGKey(0)

    # --- tiny LINEAR_LOGSOFTMAX shape: resident-weight fast path ------------
    batch, input_dim, nclass = 8, 32, 16
    kx, kw, kb = jax.random.split(key, 3)
    bound = 1.0 / (input_dim ** 0.5)
    x = jax.random.normal(kx, (batch, input_dim), dtype=jnp.float32)
    w = jax.random.uniform(kw, (nclass, input_dim), minval=-bound, maxval=bound,
                           dtype=jnp.float32)      # PyTorch layout (nclass, D)
    b = jax.random.uniform(kb, (nclass,), minval=-bound, maxval=bound,
                           dtype=jnp.float32)

    out = jax.block_until_ready(linear_logsoftmax(x, w.T, b))
    ref = jax.nn.log_softmax(x @ w.T + b, axis=1)
    assert out.shape == (batch, nclass)
    assert jnp.allclose(out, ref, atol=1e-5, rtol=1e-5)

    # --- ragged batch + class-streamed fallback path -------------------------
    batch2, input_dim2, nclass2 = 20, 64, 300
    kx2, kw2, kb2 = jax.random.split(jax.random.PRNGKey(0), 3)
    bound2 = 1.0 / (input_dim2 ** 0.5)
    x2 = jax.random.normal(kx2, (batch2, input_dim2), dtype=jnp.float32)
    w2 = jax.random.uniform(kw2, (nclass2, input_dim2), minval=-bound2,
                            maxval=bound2, dtype=jnp.float32)
    b2 = jax.random.uniform(kb2, (nclass2,), minval=-bound2, maxval=bound2,
                            dtype=jnp.float32)

    out2 = jax.block_until_ready(
        linear_logsoftmax(x2, w2.T, b2, force_stream=True))
    ref2 = jax.nn.log_softmax(x2 @ w2.T + b2, axis=1)
    assert out2.shape == (batch2, nclass2)
    assert jnp.allclose(out2, ref2, atol=1e-4, rtol=1e-4)

    print("KERNEL_OK")
</pallas_src>

<mosaic_0001>
module attributes {stable_mosaic.version = 11 : i64} {
  func.func @_resident_kernel(%arg0: i32, %arg1: memref<8x32xf32, #tpu.memory_space<vmem>>, %arg2: memref<32x128xf32, #tpu.memory_space<vmem>>, %arg3: memref<1x128xf32, #tpu.memory_space<vmem>>, %arg4: memref<8x128xf32, #tpu.memory_space<vmem>>) attributes {dimension_semantics = [#tpu.dimension_semantics<parallel>], iteration_bounds = array<i64: 1>, scalar_prefetch = 0 : i64, scratch_operands = 0 : i64, tpu.core_type = #tpu.core_type<tc>, window_params = [{transform_indices = @transform_0, window_bounds = array<i64: 8, 32>}, {pipeline_mode = #tpu.pipeline_mode<synchronous>, transform_indices = @transform_1, window_bounds = array<i64: 32, 128>}, {pipeline_mode = #tpu.pipeline_mode<synchronous>, transform_indices = @transform_2, window_bounds = array<i64: 1, 128>}, {transform_indices = @transform_3, window_bounds = array<i64: 8, 128>}]} {
    %c0 = arith.constant 0 : index
    %c0_0 = arith.constant 0 : index
    %0 = vector.load %arg1[%c0, %c0_0] : memref<8x32xf32, #tpu.memory_space<vmem>>, vector<8x32xf32>
    %c0_1 = arith.constant 0 : index
    %c0_2 = arith.constant 0 : index
    %1 = vector.load %arg2[%c0_1, %c0_2] : memref<32x128xf32, #tpu.memory_space<vmem>>, vector<32x128xf32>
    %cst = arith.constant dense<0.000000e+00> : vector<8x128xf32>
    %2 = tpu.matmul %0, %1, %cst {dimension_numbers = #tpu.dot_dimension_numbers<[1], [0], [0], [1], [0, 0, 1, 1], [], []>} : vector<8x32xf32>, vector<32x128xf32>, vector<8x128xf32> -> vector<8x128xf32>
    %c0_3 = arith.constant 0 : index
    %c0_4 = arith.constant 0 : index
    %3 = vector.load %arg3[%c0_3, %c0_4] : memref<1x128xf32, #tpu.memory_space<vmem>>, vector<1x128xf32>
    %4 = vector.broadcast %3 : vector<1x128xf32> to vector<8x128xf32>
    %5 = arith.addf %2, %4 : vector<8x128xf32>
    %cst_5 = arith.constant dense<0xFF800000> : vector<8xf32>
    %6 = vector.multi_reduction <maximumf>, %5, %cst_5 [1] : vector<8x128xf32> to vector<8xf32>
    %7 = vector.shape_cast %6 : vector<8xf32> to vector<8x1xf32>
    %8 = vector.broadcast %7 : vector<8x1xf32> to vector<8x128xf32>
    %9 = arith.subf %5, %8 : vector<8x128xf32>
    %10 = math.exp %9 : vector<8x128xf32>
    %cst_6 = arith.constant dense<0.000000e+00> : vector<8xf32>
    %11 = vector.multi_reduction <add>, %10, %cst_6 [1] : vector<8x128xf32> to vector<8xf32>
    %12 = vector.shape_cast %11 : vector<8xf32> to vector<8x1xf32>
    %13 = math.log %12 : vector<8x1xf32>
    %14 = vector.broadcast %13 : vector<8x1xf32> to vector<8x128xf32>
    %15 = arith.subf %9, %14 : vector<8x128xf32>
    %c0_7 = arith.constant 0 : index
    %c0_8 = arith.constant 0 : index
    %16 = vector.load %arg4[%c0_7, %c0_8] : memref<8x128xf32, #tpu.memory_space<vmem>>, vector<8x128xf32>
    tpu.vector_store %arg4[%c0_7, %c0_8], %15 {strides = array<i32>} : memref<8x128xf32, #tpu.memory_space<vmem>>, vector<8x128xf32>,
    return
  }
  func.func @transform_0(%arg0: i32) -> (i32, i32) {
    %c0_i32 = arith.constant 0 : i32
    %c0_i32_0 = arith.constant 0 : i32
    return %arg0, %c0_i32 : i32, i32
  }
  func.func @transform_1(%arg0: i32) -> (i32, i32) {
    %c0_i32 = arith.constant 0 : i32
    %c0_i32_0 = arith.constant 0 : i32
    %c0_i32_1 = arith.constant 0 : i32
    return %c0_i32, %c0_i32_0 : i32, i32
  }
  func.func @transform_2(%arg0: i32) -> (i32, i32) {
    %c0_i32 = arith.constant 0 : i32
    %c0_i32_0 = arith.constant 0 : i32
    %c0_i32_1 = arith.constant 0 : i32
    return %c0_i32, %c0_i32_0 : i32, i32
  }
  func.func @transform_3(%arg0: i32) -> (i32, i32) {
    %c0_i32 = arith.constant 0 : i32
    %c0_i32_0 = arith.constant 0 : i32
    return %arg0, %c0_i32 : i32, i32
  }
}

</mosaic_0001>

<llo_original>
// kernel: tpu_custom_call.1
$region0: #{tpu_custom_call.1}
  #allocation0 [shape = 'u32[]', space=smem, size = 0x4, offset = 0x4, fixed_abs, tag = 'smem constant byte address 0x4 - core index']
  #allocation1 [shape = 'u32[144,128]{1,0:T(1,128)}', space=vmem, size = 0x12000, scoped, tag = 'internal scratch']
  %s0 = inlined_call_operand.hbm [shape: f32[8,32], index: 0, kind: input, shape index: {}]
  %s1 = inlined_call_operand.hbm [shape: f32[32,128], index: 1, kind: input, shape index: {}]
  %s2 = inlined_call_operand.vmem [shape: f32[1,128], index: 2, kind: input, shape index: {}]
  %s3 = inlined_call_operand.hbm [shape: f32[8,128], index: 3, kind: output, shape index: {}]
  %s4 = sld [smem:[#allocation0]]
  $region30: #{tpu_custom_call.1} parent=0
    _
  %s6 = ssub.s32 1, %s4
  %s7 = scalar_select 0, %s6, %s4
  $region1: #{tpu_custom_call.1} parent=0
    #allocation2 [shape = 'u8[4096]{0}', space=vmem, size = 0x1000, scoped, tag = 'input window, operand 0, single buffered']
    #allocation3 [shape = 's32[1]{0}', space=sflag, size = 0x4, scoped, tag = 'scoped memory for tpu_custom_call.1']
    #allocation4 [shape = 's32[1]{0}', space=sflag, size = 0x4, scoped, tag = 'scoped memory for tpu_custom_call.1']
    #allocation5 [shape = 'u8[16384]{0}', space=vmem, size = 0x4000, scoped, tag = 'input window, operand 1, single buffered']
    #allocation6 [shape = 's32[1]{0}', space=sflag, size = 0x4, scoped, tag = 'scoped memory for tpu_custom_call.1']
    #allocation7 [shape = 'u8[4096]{0}', space=vmem, size = 0x1000, scoped, tag = 'output window, operand 0, single buffered']
    %8 = vsyncpa [#allocation3], 0
    %9 = vsyncpa [#allocation6], 0
    %10 = vsyncpa [#allocation4], 0
    // Predicated region
    $region2: #{tpu_custom_call.1} parent=1 // pred_check
      _
    $region3: #{tpu_custom_call.1} parent=1 // pred_check_branch
      %12 = sbr.rel (0) target = $region5
    $region4: #{tpu_custom_call.1} parent=1 // pred_region
      %s14 = ssub.s32 128, 128
      %15 = vsyncadd [#allocation3], %s14
      %s17 = sshll.u32 [#allocation2], 4
      %s18 = int_to_ptr.vmem [resolvable:$true] %s17
      %20 = dma.hbm_to_vmem [thread:$0]  %s0, 128, %s18, [#allocation3]
    $region5: #{tpu_custom_call.1} parent=1 // pred_fallthru
      _
    // Predicated region
    $region6: #{tpu_custom_call.1} parent=1 // pred_check
      _
    $region7: #{tpu_custom_call.1} parent=1 // pred_check_branch
      %22 = sbr.rel (0) target = $region9
    $region8: #{tpu_custom_call.1} parent=1 // pred_region
      %s24 = ssub.s32 512, 512
      %25 = vsyncadd [#allocation6], %s24
      %s26 = sshll.u32 [#allocation5], 4
      %s27 = int_to_ptr.vmem [resolvable:$true] %s26
      %32 = dma.hbm_to_vmem [thread:$0]  %s1, 512, %s27, [#allocation6], 128, 128, 8
    $region9: #{tpu_custom_call.1} parent=1 // pred_fallthru
      _
    // Predicated region
    $region10: #{tpu_custom_call.1} parent=1 // pred_check
      _
    $region11: #{tpu_custom_call.1} parent=1 // pred_check_branch
      %34 = sbr.rel (0) target = $region13
    $region12: #{tpu_custom_call.1} parent=1 // pred_region
      _
    $region13: #{tpu_custom_call.1} parent=1 // pred_fallthru
      _
    // Predicated region
    $region14: #{tpu_custom_call.1} parent=1 // pred_check
      _
    $region15: #{tpu_custom_call.1} parent=1 // pred_check_branch
      %36 = sbr.rel (0) target = $region17
    $region16: #{tpu_custom_call.1} parent=1 // pred_region
      %37 = dma.done [#allocation3], 128
    $region17: #{tpu_custom_call.1} parent=1 // pred_fallthru
      _
    // Predicated region
    $region18: #{tpu_custom_call.1} parent=1 // pred_check
      _
    $region19: #{tpu_custom_call.1} parent=1 // pred_check_branch
      %39 = sbr.rel (0) target = $region21
    $region20: #{tpu_custom_call.1} parent=1 // pred_region
      %40 = dma.done [#allocation6], 512
    $region21: #{tpu_custom_call.1} parent=1 // pred_fallthru
      _
    %v41 = vld [vmem:[#allocation2] sm:$0xff]
    %v42 = vld [vmem:[#allocation5] sm:$0xff]
    %v43 = vld [vmem:[#allocation5 + $0x8] sm:$0xff]
    %v44 = vld [vmem:[#allocation5 + $0x10] sm:$0xff]
    %v45 = vld [vmem:[#allocation5 + $0x18] sm:$0xff]
    %v46 = vld [vmem:[%s2] sm:$0x1]
    %v48 = vlaneseq
    %v49 = vshrl.u32 %v48, 7
    %v50 = vsub.s32 0, %v49
    %v51 = vrot.slane %v46, %v50
    %vm53 = vcmask 261120
    %v55 = vsel %vm53, %v41, 0
    %57 = vmatprep.subr.mxu0 0.0
    %58 = vmatpush1.msra.mxu0 0.0
    %59 = vmatprep.subr.mxu0 0.0
    %60 = vmatpush1.msra.mxu0 0.0
    %61 = vmatprep.subr.mxu0 0.0
    %62 = vmatpush1.msra.mxu0 0.0
    %63 = vmatprep.subr.mxu0 0.0
    %64 = vmatpush1.msra.mxu0 0.0
    %65 = vmatprep.subr.mxu0 0.0
    %66 = vmatpush1.msra.mxu0 0.0
    %67 = vmatprep.subr.mxu0 0.0
    %68 = vmatpush1.msra.mxu0 0.0
    %69 = vmatprep.subr.mxu0 0.0
    %70 = vmatpush1.msra.mxu0 0.0
    %71 = vmatprep.subr.mxu0 0.0
    %72 = vmatpush1.msra.mxu0 0.0
    %73 = vmatprep.subr.mxu0 0.0
    %74 = vmatpush1.msra.mxu0 0.0
    %75 = vmatprep.subr.mxu0 0.0
    %76 = vmatpush1.msra.mxu0 0.0
    %77 = vmatprep.subr.mxu0 0.0
    %78 = vmatpush1.msra.mxu0 0.0
    %79 = vmatprep.subr.mxu0 0.0
    %80 = vmatpush1.msra.mxu0 0.0
    %81 = vmatprep.subr.mxu0 0.0
    %82 = vmatpush1.msra.mxu0 %v45
    %83 = vmatprep.subr.mxu0 0.0
    %84 = vmatpush1.msra.mxu0 %v44
    %85 = vmatprep.subr.mxu0 0.0
    %86 = vmatpush1.msra.mxu0 %v43
    %87 = vmatprep.subr.mxu0 0.0
    %88 = vmatpush1.msra.mxu0 %v42
    %89 = vmatprep.subr.mxu0 0.0
    %90 = vmatpush2.msra.mxu0 0.0
    %91 = vmatprep.subr.mxu0 0.0
    %92 = vmatpush2.msra.mxu0 0.0
    %93 = vmatprep.subr.mxu0 0.0
    %94 = vmatpush2.msra.mxu0 0.0
    %95 = vmatprep.subr.mxu0 0.0
    %96 = vmatpush2.msra.mxu0 0.0
    %97 = vmatprep.subr.mxu0 0.0
    %98 = vmatpush2.msra.mxu0 0.0
    %99 = vmatprep.subr.mxu0 0.0
    %100 = vmatpush2.msra.mxu0 0.0
    %101 = vmatprep.subr.mxu0 0.0
    %102 = vmatpush2.msra.mxu0 0.0
    %103 = vmatprep.subr.mxu0 0.0
    %104 = vmatpush2.msra.mxu0 0.0
    %105 = vmatprep.subr.mxu0 0.0
    %106 = vmatpush2.msra.mxu0 0.0
    %107 = vmatprep.subr.mxu0 0.0
    %108 = vmatpush2.msra.mxu0 0.0
    %109 = vmatprep.subr.mxu0 0.0
    %110 = vmatpush2.msra.mxu0 0.0
    %111 = vmatprep.subr.mxu0 0.0
    %112 = vmatpush2.msra.mxu0 0.0
    %113 = vmatprep.subr.mxu0 0.0
    %114 = vmatpush2.msra.mxu0 0.0
    %115 = vmatprep.subr.mxu0 0.0
    %116 = vmatpush2.msra.mxu0 0.0
    %117 = vmatprep.subr.mxu0 0.0
    %118 = vmatpush2.msra.mxu0 0.0
    %119 = vmatprep.subr.mxu0 0.0
    %120 = vmatpush2.msra.mxu0 0.0
    %121 = vmatprep.mubr.f32.mxu0 0.0
    %122 = vmatmul.mubr.f32.gmra.mxu0 %v55
    %v123 = vpop.f32.mrf.mxu0
    %v124 = vadd.f32 %v51, %v123
    %v125 = vpop.f32.mrf.mxu0
    %126 = vdwg.mxu0
    %127 = vmax.xlane.f32.xlu0 %v124
    %v128 = vpop.xlane.xlu0 %127
    %v129 = vsub.f32 %v124, %v128
    %v130 = vmul.f32 %v129, 1.442695
    %v131 = vpow.pop %v130
    %132 = vadd.xlane.f32.xlu0 %v131
    %v133 = vpop.xlane.xlu0 %132
    %v134 = vlog2.pop %v133
    %v135 = vmul.f32 %v134, 0.6931472
    %v136 = vsub.f32 %v129, %v135
    %137 = vst [vmem:[#allocation7] sm:$0xff] %v136
    // Predicated region
    $region22: #{tpu_custom_call.1} parent=1 // pred_check
      _
    $region23: #{tpu_custom_call.1} parent=1 // pred_check_branch
      %139 = sbr.rel (0) target = $region25
    $region24: #{tpu_custom_call.1} parent=1 // pred_region
      %s141 = ssub.s32 128, 128
      %142 = vsyncadd [#allocation4], %s141
      %s144 = sshll.u32 [#allocation7], 4
      %s145 = int_to_ptr.vmem [resolvable:$true] %s144
      %147 = dma.vmem_to_hbm [thread:$0]  %s145, 128, %s3, [#allocation4]
    $region25: #{tpu_custom_call.1} parent=1 // pred_fallthru
      _
    // Predicated region
    $region26: #{tpu_custom_call.1} parent=1 // pred_check
      _
    $region27: #{tpu_custom_call.1} parent=1 // pred_check_branch
      %149 = sbr.rel (0) target = $region29
    $region28: #{tpu_custom_call.1} parent=1 // pred_region
      %150 = dma.done [#allocation4], 128
    $region29: #{tpu_custom_call.1} parent=1 // pred_fallthru
      _
    %151 = vsyncpa [#allocation3], 1
    %152 = vsyncpa [#allocation6], 1
    %153 = vsyncpa [#allocation4], 1

</llo_original>
